<compile_context>
chip_gen: v7x
topology: tpu7x:2x2x1
jax: 0.10.0
libtpu: 0.0.40
codegen_flags: <defaults>
</compile_context>

<pallas_src>
import functools

import numpy as np

import jax
import jax.numpy as jnp
from jax import lax
from jax.experimental import pallas as pl
from jax.experimental.pallas import tpu as pltpu


def _round_up(x: int, m: int) -> int:
    return ((x + m - 1) // m) * m


@functools.lru_cache(maxsize=None)
def _chip_params():
    """(physical VMEM bytes per TC, TensorCores per chip, flops/byte HBM<->MXU crossover)."""
    vmem_phys, num_tc, crossover = 64 << 20, 1, 300.0   # conservative default
    try:
        kind = jax.devices()[0].device_kind.lower()
    except Exception:
        kind = ""
    if "v7" in kind:
        vmem_phys, num_tc, crossover = 64 << 20, 2, 310.0
    elif "v6" in kind:
        vmem_phys, num_tc, crossover = 128 << 20, 1, 640.0
    elif "v5p" in kind or "v4" in kind:
        vmem_phys, num_tc, crossover = 128 << 20, 2, 300.0
    elif "v5" in kind:
        vmem_phys, num_tc, crossover = 128 << 20, 1, 240.0
    try:
        cap = getattr(pltpu.get_tpu_info(), "vmem_capacity_bytes", None)
        if cap:
            vmem_phys = min(vmem_phys, int(cap))   # never exceed what the chip reports
    except Exception:
        pass
    return vmem_phys, num_tc, crossover


def _compute_dtype(dtype):
    # bf16 inputs stay bf16 into the MXU; everything else computes in f32.
    return jnp.bfloat16 if dtype == jnp.bfloat16 else jnp.float32


def _finalize(out_f32, out_dtype):
    # Round + clip for integer image dtypes (e.g. uint8) instead of truncation.
    # TODO(synk): PyTorch's float->uint8 conversion may round-to-nearest-even; exact-.5
    # pixels can differ by 1 LSB from this round-half-up.
    if jnp.issubdtype(out_dtype, jnp.integer):
        info = jnp.iinfo(out_dtype)
        out_f32 = jnp.clip(jnp.floor(out_f32 + 0.5), info.min, info.max)
    return out_f32.astype(out_dtype)


# ---------------------------------------------------------------------------
# Interpolation matrices (pure numpy -> baked in as compile-time constants).
# ---------------------------------------------------------------------------
def _bilinear_matrix(out_size: int, in_size: int) -> np.ndarray:
    """(out_size, in_size) bilinear interpolation matrix, half-pixel centers
    (matches torch F.interpolate(mode='bilinear', align_corners=False,
    antialias=False))."""
    if out_size == in_size:
        return np.eye(out_size, dtype=np.float32)
    # TODO(synk): torchvision v2 Resize defaults to antialias=True when downscaling;
    # plain 2-tap bilinear implemented here.
    scale = in_size / out_size
    out_idx = np.arange(out_size, dtype=np.float64)
    src = np.clip((out_idx + 0.5) * scale - 0.5, 0.0, float(in_size - 1))
    lo = np.floor(src).astype(np.int64)
    frac = (src - lo).astype(np.float32)
    hi = np.minimum(lo + 1, in_size - 1)
    w = np.zeros((out_size, in_size), np.float32)
    rows = np.arange(out_size)
    np.add.at(w, (rows, lo), 1.0 - frac)
    np.add.at(w, (rows, hi), frac)
    return w


# ---------------------------------------------------------------------------
# BlockSpec helpers.
# ---------------------------------------------------------------------------
def _const_spec(shape, index_map):
    """BlockSpec for a grid-constant operand: single-buffered when supported."""
    try:
        return pl.BlockSpec(shape, index_map, pipeline_mode=pl.Buffered(1))
    except TypeError:
        return pl.BlockSpec(shape, index_map)


def _pick_rows(nc, row_bytes, budget, num_tc, align):
    """Rows per block: big VMEM-budgeted blocks, aligned for dtype packing, balanced
    across TensorCores (steps rounded to a multiple of the TC count)."""
    if nc <= align:
        return nc                               # block == full dim -> always legal
    cap = max(align, (budget // max(2 * row_bytes, 1)) // align * align)
    steps = pl.cdiv(nc, cap)
    if num_tc > 1:
        steps = _round_up(max(steps, num_tc), num_tc)
    bm = min(cap, _round_up(pl.cdiv(nc, steps), align))
    return max(align, bm)


def _pick_h_tile(h, cap):
    """H tile: prefer a multiple-of-32 divisor of H (no ragged tail); otherwise a
    multiple of 32 with in-kernel tail masking."""
    cap = max(32, (int(cap) // 32) * 32)
    if h <= cap:
        return h
    t = cap
    while t >= 32:
        if h % t == 0:
            return t
        t -= 32
    return cap


# ---------------------------------------------------------------------------
# Pallas kernels.
# ---------------------------------------------------------------------------
def _kron_resize_kernel(x_ref, w_ref, o_ref):
    # x_ref: (bm, H*W) native dtype   w_ref: (H*W, nout_pad)   o_ref: (bm, nout_pad)
    x = x_ref[...].astype(w_ref.dtype)          # in-kernel cast (uint8 stays u8 in HBM)
    out = jnp.dot(x, w_ref[...], preferred_element_type=jnp.float32)
    o_ref[...] = _finalize(out, o_ref.dtype)


def _separable_resize_kernel(x_ref, wht_ref, wwt_ref, o_ref, s_acc,
                             *, ragged_h, h_total):
    # x_ref:  (bc, th, W)  native dtype       wht_ref: (th, out_h)   wwt_ref: (W, out_w)
    # o_ref:  (bc, out_h, out_w)              s_acc:   (bc, out_h, W) f32 accumulator
    j = pl.program_id(1)
    bc, th, w = x_ref.shape
    out_h = wht_ref.shape[1]
    out_w = o_ref.shape[2]
    cdt = wwt_ref.dtype

    @pl.when(j == 0)
    def _init():
        s_acc[...] = jnp.zeros_like(s_acc)

    whb = wht_ref[...]                                         # (th, out_h)
    if ragged_h:
        # Mask both weight rows AND image rows beyond H so garbage reads of the
        # ragged last H block contribute exactly 0 (0*0, never 0*inf).
        valid = (lax.broadcasted_iota(jnp.int32, (th, 1), 0) + j * th) < h_total
        whb = jnp.where(valid, whb, jnp.zeros_like(whb))
    wh_t = whb.T                                               # (out_h, th) small XLU op

    def accumulate(b):
        xb = x_ref[b].astype(cdt)                              # (th, W), in-kernel cast
        if ragged_h:
            xb = jnp.where(valid, xb, jnp.zeros_like(xb))
        # Height contraction: standard MXU orientation, lane-dense (N = W) output.
        s_acc[b] = s_acc[b] + jnp.dot(wh_t, xb, preferred_element_type=jnp.float32)

    if bc <= 16:
        for b in range(bc):                                    # unrolled, LLO-visible
            accumulate(b)
    else:
        def body(b, carry):
            accumulate(b)
            return carry
        lax.fori_loop(0, bc, body, 0)

    @pl.when(j == pl.num_programs(1) - 1)
    def _store():
        # Width contraction as ONE flat matmul; result lands directly in
        # (bc, out_h, out_w) order -> no swapaxes before the store.
        s = s_acc[...].astype(cdt).reshape(bc * out_h, w)
        o = jnp.dot(s, wwt_ref[...], preferred_element_type=jnp.float32)
        o_ref[...] = _finalize(o, o_ref.dtype).reshape(bc, out_h, out_w)


# ---------------------------------------------------------------------------
# Resize entry point.
# ---------------------------------------------------------------------------
@functools.partial(jax.jit, static_argnames=("out_h", "out_w"))
def resize_image(x: jnp.ndarray, out_h: int, out_w: int) -> jnp.ndarray:
    """Bilinear resize of an NCHW tensor to (out_h, out_w) with Pallas kernels."""
    n, c, h, w = x.shape
    if out_h == h and out_w == w:
        return x
    nc = n * c
    cdt = _compute_dtype(x.dtype)
    c_isz = jnp.dtype(cdt).itemsize
    io_isz = jnp.dtype(x.dtype).itemsize

    vmem_phys, num_tc, crossover = _chip_params()
    vmem_limit = min(max(32 << 20, int(vmem_phys) - (4 << 20)), (128 << 20) - (4 << 20))
    budget_base = int(vmem_phys * 0.8)        # conservative: works even if the constant
                                              # weight ends up double-buffered

    wh = _bilinear_matrix(out_h, h)           # (out_h, H)  numpy constant
    ww = _bilinear_matrix(out_w, w)           # (out_w, W)  numpy constant

    k = h * w
    nout = out_h * out_w
    nout_pad = _round_up(nout, 128)           # lane-dense output / full MXU N dim
    kron_w_bytes = k * nout_pad * c_isz
    weight_limit = min(budget_base // 3, 24 << 20)
    ai_kron = (2.0 * k * nout_pad) / max(k * io_isz + nout_pad * io_isz, 1)
    use_kron = kron_w_bytes <= weight_limit and (
        kron_w_bytes <= (2 << 20) or ai_kron <= 1.5 * crossover)

    if use_kron:
        # --- Kronecker single-GEMM path ---------------------------------------
        # w_kron[h*W+w, oh*out_w+ow] = Wh[oh,h] * Ww[ow,w]; zero-padded N columns.
        w_kron = np.kron(wh.T, ww.T)
        if nout_pad != nout:
            w_kron = np.pad(w_kron, ((0, 0), (0, nout_pad - nout)))
        w_kron = jnp.asarray(w_kron, dtype=cdt)

        io_budget = max(budget_base - 2 * kron_w_bytes - (4 << 20), 8 << 20)
        row_bytes = k * io_isz + nout_pad * io_isz + nout_pad * 4   # + f32 transient
        align = max(8, 32 // io_isz)           # sublane packing for u8/bf16/f32 blocks
        bm = _pick_rows(nc, row_bytes, io_budget, num_tc, align)

        x_flat = x.reshape(nc, k)              # native dtype, no pad, no wrapper cast
        cost = pl.CostEstimate(
            flops=2 * nc * k * nout_pad,
            transcendentals=0,
            bytes_accessed=nc * (k * io_isz + nout_pad * io_isz) + kron_w_bytes)

        out_flat = pl.pallas_call(
            _kron_resize_kernel,
            out_shape=jax.ShapeDtypeStruct((nc, nout_pad), x.dtype),
            grid_spec=pltpu.PrefetchScalarGridSpec(
                num_scalar_prefetch=0,
                grid=(pl.cdiv(nc, bm),),
                in_specs=[
                    pl.BlockSpec((bm, k), lambda i: (i, 0)),
                    _const_spec((k, nout_pad), lambda i: (0, 0)),
                ],
                out_specs=pl.BlockSpec((bm, nout_pad), lambda i: (i, 0)),
            ),
            compiler_params=pltpu.CompilerParams(
                dimension_semantics=("parallel",),
                vmem_limit_bytes=vmem_limit),
            cost_estimate=cost,
        )(x_flat, w_kron)
        if nout_pad != nout:
            out_flat = out_flat[:, :nout]
        return out_flat.reshape(n, c, out_h, out_w)

    # --- Separable path: height-first (per image), then one flat width matmul ----
    wht = jnp.asarray(wh.T, dtype=cdt)         # (H, out_h)
    wwt = jnp.asarray(ww.T, dtype=cdt)         # (W, out_w)

    budget = max(budget_base - 2 * w * out_w * c_isz - (4 << 20), 8 << 20)
    per_bc_rest = (4 * out_h * w                       # f32 accumulator
                   + 2 * out_h * out_w * io_isz        # output blocks
                   + 4 * out_h * max(w, out_w))        # transient f32 values
    per_bc_full = 2 * h * w * io_isz + per_bc_rest     # + x blocks at th = H
    wh_full = 2 * h * out_h * c_isz
    if budget - wh_full >= per_bc_full:
        th = h
        bc = min(nc, 64, max(1, (budget - wh_full) // per_bc_full))
    else:
        rem = budget - per_bc_rest
        per_th = 2 * w * io_isz + 2 * out_h * c_isz
        th = _pick_h_tile(h, rem // max(per_th, 1))
        bc = 1
        # TODO(synk): pathologically wide frames (even th=32, bc=1 over VMEM budget)
        # would additionally need width tiling.
    bc = max(1, int(bc))
    steps = pl.cdiv(nc, bc)
    if num_tc > 1 and nc > 1:
        steps = _round_up(max(steps, num_tc), num_tc)
        bc = max(1, min(bc, pl.cdiv(nc, steps)))
    n_hb = pl.cdiv(h, th)
    ragged_h = (h % th) != 0

    kernel = functools.partial(_separable_resize_kernel, ragged_h=ragged_h, h_total=h)
    x3 = x.reshape(nc, h, w)                   # native dtype, no pad, no wrapper cast
    cost = pl.CostEstimate(
        flops=2 * nc * (out_h * h * w + out_h * w * out_w),
        transcendentals=0,
        bytes_accessed=nc * (k * io_isz + nout * io_isz))

    out3 = pl.pallas_call(
        kernel,
        out_shape=jax.ShapeDtypeStruct((nc, out_h, out_w), x.dtype),
        grid_spec=pltpu.PrefetchScalarGridSpec(
            num_scalar_prefetch=0,
            grid=(pl.cdiv(nc, bc), n_hb),
            in_specs=[
                pl.BlockSpec((bc, th, w), lambda i, j: (i, j, 0)),
                pl.BlockSpec((th, out_h), lambda i, j: (j, 0)),
                _const_spec((w, out_w), lambda i, j: (0, 0)),
            ],
            out_specs=pl.BlockSpec((bc, out_h, out_w), lambda i, j: (i, 0, 0)),
            scratch_shapes=[pltpu.VMEM((bc, out_h, w), jnp.float32)],
        ),
        compiler_params=pltpu.CompilerParams(
            dimension_semantics=("parallel", "arbitrary"),
            vmem_limit_bytes=vmem_limit),
        cost_estimate=cost,
    )(x3, wht, wwt)
    return out3.reshape(n, c, out_h, out_w)


# ---------------------------------------------------------------------------
# Module wrapper reproducing AlternatingResize semantics.
# ---------------------------------------------------------------------------
class AlternatingResize:
    """Resize the image to a target shape cycled manually with next_shape()."""

    def __init__(self, shape_list, frequency) -> None:
        self._index = 0
        self._shape_list = shape_list
        if isinstance(frequency, int):
            self._freqency_list = [frequency for _ in range(len(shape_list))]
        else:
            assert len(frequency) == len(self._shape_list)
            self._freqency_list = frequency
        self._expanded_shape_list = []
        for _shape, _time in zip(self._shape_list, self._freqency_list):
            if isinstance(_shape, int):
                _shape = (_shape, _shape)
            self._expanded_shape_list.extend([_shape for _ in range(_time)])
        self._current_shape = self._expanded_shape_list[self._index]

    def next_shape(self):
        # TODO(synk): original module logs via logger.info; no logging here.
        self._current_shape = self._expanded_shape_list[self._index]
        self._index = (self._index + 1) % len(self._expanded_shape_list)

    def __call__(self, *args):
        out_h, out_w = self._current_shape
        if len(args) == 1:
            return resize_image(args[0], out_h, out_w)
        else:
            return (resize_image(args[0], out_h, out_w), *args[1:])

    def extra_repr(self) -> str:
        return f"shapes={self._shape_list}, freq={self._freqency_list}"


# ---------------------------------------------------------------------------
# Pure-JAX reference for correctness check.
# ---------------------------------------------------------------------------
def _resize_ref(x, out_h, out_w):
    n, c, h, w = x.shape
    wh = jnp.asarray(_bilinear_matrix(out_h, h))
    ww = jnp.asarray(_bilinear_matrix(out_w, w))
    tmp = jnp.einsum("oh,nchw->ncow", wh, x.astype(jnp.float32))
    return jnp.einsum("ncow,vw->ncov", tmp, ww)


if __name__ == "__main__":
    key = jax.random.PRNGKey(0)
    x = jax.random.normal(key, (2, 4, 16, 16), dtype=jnp.float32)

    module = AlternatingResize(shape_list=[8, 12], frequency=1)

    # Small image -> Kronecker single-GEMM path (16x16 -> 8x8), padded lane-dense N.
    out = jax.block_until_ready(module(x))
    assert out.shape == (2, 4, 8, 8), out.shape
    assert jnp.allclose(out, _resize_ref(x, 8, 8), atol=1e-4, rtol=1e-4)

    # Cycle target shape; passthrough extra args (16x16 -> 12x12).
    module.next_shape()
    module.next_shape()  # current shape is now (12, 12)
    labels = jnp.arange(2, dtype=jnp.int32)
    out2, labels_out = module(x, labels)
    out2 = jax.block_until_ready(out2)
    assert out2.shape == (2, 4, 12, 12), out2.shape
    assert jnp.allclose(out2, _resize_ref(x, 12, 12), atol=1e-4, rtol=1e-4)
    assert (labels_out == labels).all()

    # Larger image forces the separable (height-first, transpose-free) path on all gens.
    x_big = jax.random.normal(jax.random.PRNGKey(1), (2, 3, 96, 96), dtype=jnp.float32)
    out3 = jax.block_until_ready(resize_image(x_big, 48, 48))
    assert out3.shape == (2, 3, 48, 48), out3.shape
    assert jnp.allclose(out3, _resize_ref(x_big, 48, 48), atol=1e-4, rtol=1e-4)

    # uint8 image: native-dtype HBM traffic, in-kernel cast + round/clip on store.
    x_u8 = jax.random.randint(jax.random.PRNGKey(2), (2, 3, 16, 16), 0, 256).astype(jnp.uint8)
    out4 = jax.block_until_ready(resize_image(x_u8, 8, 8))
    ref4 = jnp.clip(jnp.floor(_resize_ref(x_u8, 8, 8) + 0.5), 0, 255).astype(jnp.uint8)
    assert out4.shape == (2, 3, 8, 8), out4.shape
    assert int(jnp.abs(out4.astype(jnp.int32) - ref4.astype(jnp.int32)).max()) <= 1

    print("KERNEL_OK")
</pallas_src>

<mosaic_0001>
module attributes {stable_mosaic.version = 11 : i64} {
  func.func @_kron_resize_kernel(%arg0: i32, %arg1: memref<8x256xf32, #tpu.memory_space<vmem>>, %arg2: memref<256x128xf32, #tpu.memory_space<vmem>>, %arg3: memref<8x128xf32, #tpu.memory_space<vmem>>) attributes {dimension_semantics = [#tpu.dimension_semantics<parallel>], iteration_bounds = array<i64: 1>, scalar_prefetch = 0 : i64, scratch_operands = 0 : i64, tpu.core_type = #tpu.core_type<tc>, window_params = [{transform_indices = @transform_0, window_bounds = array<i64: 8, 256>}, {pipeline_mode = #tpu.pipeline_mode<synchronous>, transform_indices = @transform_1, window_bounds = array<i64: 256, 128>}, {transform_indices = @transform_2, window_bounds = array<i64: 8, 128>}]} {
    %c0 = arith.constant 0 : index
    %c0_0 = arith.constant 0 : index
    %0 = vector.load %arg1[%c0, %c0_0] : memref<8x256xf32, #tpu.memory_space<vmem>>, vector<8x256xf32>
    %c0_1 = arith.constant 0 : index
    %c0_2 = arith.constant 0 : index
    %1 = vector.load %arg2[%c0_1, %c0_2] : memref<256x128xf32, #tpu.memory_space<vmem>>, vector<256x128xf32>
    %cst = arith.constant dense<0.000000e+00> : vector<8x128xf32>
    %2 = tpu.matmul %0, %1, %cst {dimension_numbers = #tpu.dot_dimension_numbers<[1], [0], [0], [1], [0, 0, 1, 1], [], []>} : vector<8x256xf32>, vector<256x128xf32>, vector<8x128xf32> -> vector<8x128xf32>
    %c0_3 = arith.constant 0 : index
    %c0_4 = arith.constant 0 : index
    %3 = vector.load %arg3[%c0_3, %c0_4] : memref<8x128xf32, #tpu.memory_space<vmem>>, vector<8x128xf32>
    tpu.vector_store %arg3[%c0_3, %c0_4], %2 {strides = array<i32>} : memref<8x128xf32, #tpu.memory_space<vmem>>, vector<8x128xf32>,
    return
  }
  func.func @transform_0(%arg0: i32) -> (i32, i32) {
    %c0_i32 = arith.constant 0 : i32
    %c0_i32_0 = arith.constant 0 : i32
    return %arg0, %c0_i32 : i32, i32
  }
  func.func @transform_1(%arg0: i32) -> (i32, i32) {
    %c0_i32 = arith.constant 0 : i32
    %c0_i32_0 = arith.constant 0 : i32
    %c0_i32_1 = arith.constant 0 : i32
    return %c0_i32, %c0_i32_0 : i32, i32
  }
  func.func @transform_2(%arg0: i32) -> (i32, i32) {
    %c0_i32 = arith.constant 0 : i32
    %c0_i32_0 = arith.constant 0 : i32
    return %arg0, %c0_i32 : i32, i32
  }
}

</mosaic_0001>

<llo_original>
// kernel: resize_image.1
$region0: #{resize_image.1}
  #allocation0 [shape = 'u32[]', space=smem, size = 0x4, offset = 0x4, fixed_abs, tag = 'smem constant byte address 0x4 - core index']
  #allocation1 [shape = 'u32[144,128]{1,0:T(1,128)}', space=vmem, size = 0x12000, scoped, tag = 'internal scratch']
  %s0 = inlined_call_operand.vmem [shape: f32[8,256], index: 0, kind: input, shape index: {}]
  %s1 = inlined_call_operand.hbm [shape: f32[256,128], index: 1, kind: input, shape index: {}]
  %s2 = inlined_call_operand.vmem [shape: f32[8,128], index: 2, kind: output, shape index: {}]
  %s3 = sld [smem:[#allocation0]]
  $region22: #{resize_image.1} parent=0
    _
  %s5 = ssub.s32 1, %s3
  %s6 = scalar_select 0, %s5, %s3
  $region1: #{resize_image.1} parent=0
    #allocation2 [shape = 'u8[131072]{0}', space=vmem, size = 0x20000, scoped, tag = 'input window, operand 1, single buffered']
    #allocation3 [shape = 's32[1]{0}', space=sflag, size = 0x4, scoped, tag = 'scoped memory for resize_image.1']
    %7 = vsyncpa [#allocation3], 0
    // Predicated region
    $region2: #{resize_image.1} parent=1 // pred_check
      _
    $region3: #{resize_image.1} parent=1 // pred_check_branch
      %9 = sbr.rel (0) target = $region5
    $region4: #{resize_image.1} parent=1 // pred_region
      _
    $region5: #{resize_image.1} parent=1 // pred_fallthru
      _
    // Predicated region
    $region6: #{resize_image.1} parent=1 // pred_check
      _
    $region7: #{resize_image.1} parent=1 // pred_check_branch
      %11 = sbr.rel (0) target = $region9
    $region8: #{resize_image.1} parent=1 // pred_region
      %s13 = ssub.s32 4096, 4096
      %14 = vsyncadd [#allocation3], %s13
      %s15 = sshll.u32 [#allocation2], 4
      %s16 = int_to_ptr.vmem [resolvable:$true] %s15
      %21 = dma.hbm_to_vmem [thread:$0]  %s1, 4096, %s16, [#allocation3], 128, 128, 8
    $region9: #{resize_image.1} parent=1 // pred_fallthru
      _
    // Predicated region
    $region10: #{resize_image.1} parent=1 // pred_check
      _
    $region11: #{resize_image.1} parent=1 // pred_check_branch
      %23 = sbr.rel (0) target = $region13
    $region12: #{resize_image.1} parent=1 // pred_region
      %24 = dma.done [#allocation3], 4096
    $region13: #{resize_image.1} parent=1 // pred_fallthru
      _
    %v25 = vld [vmem:[%s0] sm:$0xff]
    %v26 = vld [vmem:[%s0 + $0x8] sm:$0xff]
    %v27 = vld [vmem:[#allocation2] sm:$0xff]
    %v28 = vld [vmem:[#allocation2 + $0x8] sm:$0xff]
    %v29 = vld [vmem:[#allocation2 + $0x10] sm:$0xff]
    %v30 = vld [vmem:[#allocation2 + $0x18] sm:$0xff]
    %v31 = vld [vmem:[#allocation2 + $0x20] sm:$0xff]
    %v32 = vld [vmem:[#allocation2 + $0x28] sm:$0xff]
    %v33 = vld [vmem:[#allocation2 + $0x30] sm:$0xff]
    %v34 = vld [vmem:[#allocation2 + $0x38] sm:$0xff]
    %v35 = vld [vmem:[#allocation2 + $0x40] sm:$0xff]
    %v36 = vld [vmem:[#allocation2 + $0x48] sm:$0xff]
    %v37 = vld [vmem:[#allocation2 + $0x50] sm:$0xff]
    %v38 = vld [vmem:[#allocation2 + $0x58] sm:$0xff]
    %v39 = vld [vmem:[#allocation2 + $0x60] sm:$0xff]
    %v40 = vld [vmem:[#allocation2 + $0x68] sm:$0xff]
    %v41 = vld [vmem:[#allocation2 + $0x70] sm:$0xff]
    %v42 = vld [vmem:[#allocation2 + $0x78] sm:$0xff]
    %v43 = vld [vmem:[#allocation2 + $0x80] sm:$0xff]
    %v44 = vld [vmem:[#allocation2 + $0x88] sm:$0xff]
    %v45 = vld [vmem:[#allocation2 + $0x90] sm:$0xff]
    %v46 = vld [vmem:[#allocation2 + $0x98] sm:$0xff]
    %v47 = vld [vmem:[#allocation2 + $0xa0] sm:$0xff]
    %v48 = vld [vmem:[#allocation2 + $0xa8] sm:$0xff]
    %v49 = vld [vmem:[#allocation2 + $0xb0] sm:$0xff]
    %v50 = vld [vmem:[#allocation2 + $0xb8] sm:$0xff]
    %v51 = vld [vmem:[#allocation2 + $0xc0] sm:$0xff]
    %v52 = vld [vmem:[#allocation2 + $0xc8] sm:$0xff]
    %v53 = vld [vmem:[#allocation2 + $0xd0] sm:$0xff]
    %v54 = vld [vmem:[#allocation2 + $0xd8] sm:$0xff]
    %v55 = vld [vmem:[#allocation2 + $0xe0] sm:$0xff]
    %v56 = vld [vmem:[#allocation2 + $0xe8] sm:$0xff]
    %v57 = vld [vmem:[#allocation2 + $0xf0] sm:$0xff]
    %v58 = vld [vmem:[#allocation2 + $0xf8] sm:$0xff]
    %59 = vmatprep.subr.mxu0 0.0
    %60 = vmatpush1.msra.mxu0 %v27
    %61 = vmatprep.subr.mxu0 0.0
    %62 = vmatpush1.msra.mxu0 %v28
    %63 = vmatprep.subr.mxu0 0.0
    %64 = vmatpush1.msra.mxu0 %v29
    %65 = vmatprep.subr.mxu0 0.0
    %66 = vmatpush1.msra.mxu0 %v30
    %67 = vmatprep.subr.mxu0 0.0
    %68 = vmatpush1.msra.mxu0 %v31
    %69 = vmatprep.subr.mxu0 0.0
    %70 = vmatpush1.msra.mxu0 %v32
    %71 = vmatprep.subr.mxu0 0.0
    %72 = vmatpush1.msra.mxu0 %v33
    %73 = vmatprep.subr.mxu0 0.0
    %74 = vmatpush1.msra.mxu0 %v34
    %75 = vmatprep.subr.mxu0 0.0
    %76 = vmatpush1.msra.mxu0 %v35
    %77 = vmatprep.subr.mxu0 0.0
    %78 = vmatpush1.msra.mxu0 %v36
    %79 = vmatprep.subr.mxu0 0.0
    %80 = vmatpush1.msra.mxu0 %v37
    %81 = vmatprep.subr.mxu0 0.0
    %82 = vmatpush1.msra.mxu0 %v38
    %83 = vmatprep.subr.mxu0 0.0
    %84 = vmatpush1.msra.mxu0 %v39
    %85 = vmatprep.subr.mxu0 0.0
    %86 = vmatpush1.msra.mxu0 %v40
    %87 = vmatprep.subr.mxu0 0.0
    %88 = vmatpush1.msra.mxu0 %v41
    %89 = vmatprep.subr.mxu0 0.0
    %90 = vmatpush1.msra.mxu0 %v42
    %91 = vmatprep.subr.mxu0 0.0
    %92 = vmatpush1.msra.mxu0 %v43
    %93 = vmatprep.subr.mxu0 0.0
    %94 = vmatpush1.msra.mxu0 %v44
    %95 = vmatprep.subr.mxu0 0.0
    %96 = vmatpush1.msra.mxu0 %v45
    %97 = vmatprep.subr.mxu0 0.0
    %98 = vmatpush1.msra.mxu0 %v46
    %99 = vmatprep.subr.mxu0 0.0
    %100 = vmatpush1.msra.mxu0 %v47
    %101 = vmatprep.subr.mxu0 0.0
    %102 = vmatpush1.msra.mxu0 %v48
    %103 = vmatprep.subr.mxu0 0.0
    %104 = vmatpush1.msra.mxu0 %v49
    %105 = vmatprep.subr.mxu0 0.0
    %106 = vmatpush1.msra.mxu0 %v50
    %107 = vmatprep.subr.mxu0 0.0
    %108 = vmatpush1.msra.mxu0 %v51
    %109 = vmatprep.subr.mxu0 0.0
    %110 = vmatpush1.msra.mxu0 %v52
    %111 = vmatprep.subr.mxu0 0.0
    %112 = vmatpush1.msra.mxu0 %v53
    %113 = vmatprep.subr.mxu0 0.0
    %114 = vmatpush1.msra.mxu0 %v54
    %115 = vmatprep.subr.mxu0 0.0
    %116 = vmatpush1.msra.mxu0 %v55
    %117 = vmatprep.subr.mxu0 0.0
    %118 = vmatpush1.msra.mxu0 %v56
    %119 = vmatprep.subr.mxu0 0.0
    %120 = vmatpush1.msra.mxu0 %v57
    %121 = vmatprep.subr.mxu0 0.0
    %122 = vmatpush1.msra.mxu0 %v58
    %123 = vmatprep.mubr.f32.mxu0 %v26
    %124 = vmatmul.mubr.f32.gmra.mrb[0].mxu0 %v25
    %v125 = vpop.f32.mrb[0].mxu0
    %v126 = vadd.f32 0.0, %v125
    %v127 = vpop.f32.mrb[0].mxu0
    %128 = vdwg.mxu0
    %129 = vst [vmem:[%s2] sm:$0xff] %v126
    // Predicated region
    $region14: #{resize_image.1} parent=1 // pred_check
      _
    $region15: #{resize_image.1} parent=1 // pred_check_branch
      %131 = sbr.rel (0) target = $region17
    $region16: #{resize_image.1} parent=1 // pred_region
      _
    $region17: #{resize_image.1} parent=1 // pred_fallthru
      _
    // Predicated region
    $region18: #{resize_image.1} parent=1 // pred_check
      _
    $region19: #{resize_image.1} parent=1 // pred_check_branch
      %133 = sbr.rel (0) target = $region21
    $region20: #{resize_image.1} parent=1 // pred_region
      _
    $region21: #{resize_image.1} parent=1 // pred_fallthru
      _
    %134 = vsyncpa [#allocation3], 1

</llo_original>
